<compile_context>
chip_gen: v7x
topology: tpu7x:2x2x1
jax: 0.10.0
libtpu: 0.0.40
codegen_flags: <defaults>
</compile_context>

<pallas_src>
import jax
import jax.numpy as jnp
import numpy as np
from jax.experimental import pallas as pl
from jax.experimental.pallas import tpu as pltpu

BN_EPS = 1e-5


def _critic_kernel(s_ref, a_ref, w1s_ref, w23_ref, misc_ref, out_ref):
    """Fused critic MLP: 3 x (Linear -> BatchNorm1d(train) -> ReLU) -> Linear(->1).

    Operands:
      s_ref    [B, state_size]            f32
      a_ref    [B, action_size]           f32
      w1s_ref  [state_size, fcs1]         bf16   (state half of fc1)
      w23_ref  [fcs1 + fc2, fc2]          bf16   (w2 rows, then w3 rows zero-padded to fc2 lanes)
      misc_ref [action_size + 8, fcs1]    f32    rows: w1a[0..A-1], g1, be1, g2, be2, g3, be3, w4row, b4
    """
    F1 = w1s_ref.shape[1]   # fcs1_units (256)
    F2 = w23_ref.shape[1]   # fc2_units  (128); layer 3 also computed at this lane width
    A = a_ref.shape[1]      # action_size

    def bn_relu(h, gamma, beta):
        # Single-pass biased batch stats (matches BN training mode), clamped >= 0.
        mu = jnp.mean(h, axis=0, keepdims=True)
        ex2 = jnp.mean(h * h, axis=0, keepdims=True)
        var = jnp.maximum(ex2 - mu * mu, 0.0)
        # Fold BN affine into one scale/shift; rsqrt goes to the EUP slot (nearly free).
        scale = gamma * jax.lax.rsqrt(var + BN_EPS)
        shift = beta - mu * scale
        return jnp.maximum(h * scale + shift, 0.0)

    a = a_ref[...]  # f32 — stays on the VPU path

    # ---- Layer 1: state half on the MXU (bf16 in, f32 acc); action half (K=A, tiny)
    #      as A broadcast FMAs on the VPU instead of a second MXU round-trip.
    h1 = jnp.dot(s_ref[...].astype(jnp.bfloat16), w1s_ref[...],
                 preferred_element_type=jnp.float32)
    for k in range(A):
        h1 = h1 + a[:, k:k + 1] * misc_ref[k:k + 1, :]
    h1 = bn_relu(h1, misc_ref[A:A + 1, :], misc_ref[A + 1:A + 2, :])

    # ---- Layer 2
    h2 = jnp.dot(h1.astype(jnp.bfloat16), w23_ref[0:F1, :],
                 preferred_element_type=jnp.float32)
    h2 = bn_relu(h2, misc_ref[A + 2:A + 3, 0:F2], misc_ref[A + 3:A + 4, 0:F2])

    # ---- Layer 3 (fc3 zero-padded to F2 lanes; padded lanes stay exactly 0 through
    #      BN (gamma/beta padded with 0 -> scale=shift=0) and the head reduce).
    h3 = jnp.dot(h2.astype(jnp.bfloat16), w23_ref[F1:F1 + F2, :],
                 preferred_element_type=jnp.float32)
    h3 = bn_relu(h3, misc_ref[A + 4:A + 5, 0:F2], misc_ref[A + 5:A + 6, 0:F2])

    # ---- Head: N=1 Linear as a lane reduce (MXU would be wasted); w4 row is zero-
    #      padded so the fake lanes contribute nothing.  b4 sits in the last misc row.
    q = (jnp.sum(h3 * misc_ref[A + 6:A + 7, 0:F2], axis=-1, keepdims=True)
         + misc_ref[A + 7:A + 8, 0:1])
    out_ref[...] = q.astype(out_ref.dtype)


def pack_params(p, state_size):
    """Pack raw parameters into the 3 weight operands consumed by the kernel."""
    fcs1 = p["w1"].shape[1]
    fc2 = p["w2"].shape[1]

    def pad_lanes(x, width):
        return jnp.pad(x, ((0, 0), (0, width - x.shape[1])))

    # State half of fc1, bf16 for the MXU.
    w1s = p["w1"][:state_size, :].astype(jnp.bfloat16)

    # w2 / w3 sublane-concatenated; w3 zero-padded to fc2 lanes.  bf16.
    w23 = jnp.concatenate([p["w2"], pad_lanes(p["w3"], fc2)],
                          axis=0).astype(jnp.bfloat16)

    # Everything else (action rows of fc1, BN affines, head) in one f32 blob, padded
    # to fcs1 lanes.  gamma3/beta3/w4 rows are zero-padded so layer-3's fake lanes
    # stay exactly zero.
    misc = jnp.concatenate(
        [
            p["w1"][state_size:, :],                 # action_size rows (VPU FMA path)
            p["g1"], p["be1"],
            pad_lanes(p["g2"], fcs1), pad_lanes(p["be2"], fcs1),
            pad_lanes(p["g3"], fcs1), pad_lanes(p["be3"], fcs1),
            pad_lanes(p["w4"].T, fcs1),              # head row
            jnp.broadcast_to(p["b4"], (1, fcs1)),    # b4 broadcast over lanes
        ],
        axis=0).astype(jnp.float32)

    return {"w1s": w1s, "w23": w23, "misc": misc}


def portfolio_critic_forward(state, action, packed):
    """state: [B, state_size], action: [B, action_size] -> Q: [B, 1]."""
    B = state.shape[0]
    vmem = pl.BlockSpec(memory_space=pltpu.MemorySpace.VMEM)
    inputs = [state, action, packed["w1s"], packed["w23"], packed["misc"]]
    return pl.pallas_call(
        _critic_kernel,
        out_shape=jax.ShapeDtypeStruct((B, 1), jnp.float32),
        in_specs=[vmem] * len(inputs),
        out_specs=vmem,
        compiler_params=pltpu.CompilerParams(
            # Explicit budget: safe on every generation (v7x physical VMEM is 64 MiB).
            vmem_limit_bytes=32 * 1024 * 1024,
        ),
    )(*inputs)


def init_params(key, state_size, action_size,
                fcs1_units=256, fc2_units=128, fc3_units=64):
    """Deterministic init matching PortfolioCritic.reset_parameters() (biases = 0)."""
    d_in = state_size + action_size
    keys = jax.random.split(key, 4)

    def uniform_w(k, fan_in, fan_out, lim):
        # stored as [in, out]
        return jax.random.uniform(k, (fan_in, fan_out), jnp.float32, -lim, lim)

    p = {}
    p["w1"] = uniform_w(keys[0], d_in, fcs1_units, 1.0 / np.sqrt(d_in))
    p["w2"] = uniform_w(keys[1], fcs1_units, fc2_units, 1.0 / np.sqrt(fcs1_units))
    p["w3"] = uniform_w(keys[2], fc2_units, fc3_units, 1.0 / np.sqrt(fc2_units))
    p["w4"] = uniform_w(keys[3], fc3_units, 1, 3e-4)
    p["b4"] = jnp.zeros((1, 1), jnp.float32)

    # BatchNorm affine params (PyTorch default init: gamma=1, beta=0)
    p["g1"] = jnp.ones((1, fcs1_units), jnp.float32)
    p["be1"] = jnp.zeros((1, fcs1_units), jnp.float32)
    p["g2"] = jnp.ones((1, fc2_units), jnp.float32)
    p["be2"] = jnp.zeros((1, fc2_units), jnp.float32)
    p["g3"] = jnp.ones((1, fc3_units), jnp.float32)
    p["be3"] = jnp.zeros((1, fc3_units), jnp.float32)
    return p


def _reference_forward(state, action, p):
    """Pure-JAX f32 reference matching the PyTorch forward (training-mode BN, zero biases)."""
    x = jnp.concatenate([state, action], axis=1)

    def lin_bn_relu(x, w, g, be):
        h = x @ w
        mu = jnp.mean(h, axis=0, keepdims=True)
        var = jnp.mean((h - mu) ** 2, axis=0, keepdims=True)
        hn = (h - mu) / jnp.sqrt(var + BN_EPS)
        return jnp.maximum(hn * g + be, 0.0)

    h = lin_bn_relu(x, p["w1"], p["g1"], p["be1"])
    h = lin_bn_relu(h, p["w2"], p["g2"], p["be2"])
    h = lin_bn_relu(h, p["w3"], p["g3"], p["be3"])
    return h @ p["w4"] + p["b4"]


if __name__ == "__main__":
    state_size = 16
    action_size = 4
    batch = 16  # multiple of 16 so bf16 activations fill the packed sublane tile

    key = jax.random.PRNGKey(0)
    k_state, k_action, k_params = jax.random.split(key, 3)

    state = jax.random.normal(k_state, (batch, state_size), jnp.float32)
    action = jax.random.normal(k_action, (batch, action_size), jnp.float32)
    params = init_params(k_params, state_size, action_size)
    packed = pack_params(params, state_size)

    q = portfolio_critic_forward(state, action, packed)
    q = jax.block_until_ready(q)

    q_ref = _reference_forward(state, action, params)
    assert q.shape == (batch, 1)
    # Tolerance accounts for bf16 matmul operands vs. the pure-f32 reference
    # (outputs at init are O(1e-3) since |w4| <= 3e-4).
    np.testing.assert_allclose(np.asarray(q), np.asarray(q_ref),
                               rtol=5e-2, atol=1e-3)
    print("KERNEL_OK")
</pallas_src>

<mosaic_0001>
module attributes {stable_mosaic.version = 11 : i64} {
  func.func @_critic_kernel(%arg0: memref<16x16xf32, #tpu.memory_space<vmem>>, %arg1: memref<16x4xf32, #tpu.memory_space<vmem>>, %arg2: memref<16x256xbf16, #tpu.memory_space<vmem>>, %arg3: memref<384x128xbf16, #tpu.memory_space<vmem>>, %arg4: memref<12x256xf32, #tpu.memory_space<vmem>>, %arg5: memref<16x1xf32, #tpu.memory_space<vmem>>) attributes {dimension_semantics = [], scalar_prefetch = 0 : i64, scratch_operands = 0 : i64, tpu.core_type = #tpu.core_type<tc>} {
    %c0 = arith.constant 0 : index
    %c0_0 = arith.constant 0 : index
    %0 = vector.load %arg1[%c0, %c0_0] : memref<16x4xf32, #tpu.memory_space<vmem>>, vector<16x4xf32>
    %c0_1 = arith.constant 0 : index
    %c0_2 = arith.constant 0 : index
    %1 = vector.load %arg0[%c0_1, %c0_2] : memref<16x16xf32, #tpu.memory_space<vmem>>, vector<16x16xf32>
    %2 = arith.truncf %1 : vector<16x16xf32> to vector<16x16xbf16>
    %c0_3 = arith.constant 0 : index
    %c0_4 = arith.constant 0 : index
    %3 = vector.load %arg2[%c0_3, %c0_4] : memref<16x256xbf16, #tpu.memory_space<vmem>>, vector<16x256xbf16>
    %cst = arith.constant dense<0.000000e+00> : vector<16x256xf32>
    %4 = tpu.matmul %2, %3, %cst {dimension_numbers = #tpu.dot_dimension_numbers<[1], [0], [0], [1], [0, 0, 1, 1], [], []>} : vector<16x16xbf16>, vector<16x256xbf16>, vector<16x256xf32> -> vector<16x256xf32>
    %5 = vector.extract_strided_slice %0 {offsets = [0, 0], sizes = [16, 1], strides = [1, 1]} : vector<16x4xf32> to vector<16x1xf32>
    %c0_5 = arith.constant 0 : index
    %c0_6 = arith.constant 0 : index
    %6 = vector.load %arg4[%c0_5, %c0_6] : memref<12x256xf32, #tpu.memory_space<vmem>>, vector<1x256xf32>
    %7 = vector.broadcast %5 : vector<16x1xf32> to vector<16x256xf32>
    %8 = vector.broadcast %6 : vector<1x256xf32> to vector<16x256xf32>
    %9 = arith.mulf %7, %8 : vector<16x256xf32>
    %10 = arith.addf %4, %9 : vector<16x256xf32>
    %11 = vector.extract_strided_slice %0 {offsets = [0, 1], sizes = [16, 1], strides = [1, 1]} : vector<16x4xf32> to vector<16x1xf32>
    %c1 = arith.constant 1 : index
    %c0_7 = arith.constant 0 : index
    %12 = vector.load %arg4[%c1, %c0_7] : memref<12x256xf32, #tpu.memory_space<vmem>>, vector<1x256xf32>
    %13 = vector.broadcast %11 : vector<16x1xf32> to vector<16x256xf32>
    %14 = vector.broadcast %12 : vector<1x256xf32> to vector<16x256xf32>
    %15 = arith.mulf %13, %14 : vector<16x256xf32>
    %16 = arith.addf %10, %15 : vector<16x256xf32>
    %17 = vector.extract_strided_slice %0 {offsets = [0, 2], sizes = [16, 1], strides = [1, 1]} : vector<16x4xf32> to vector<16x1xf32>
    %c2 = arith.constant 2 : index
    %c0_8 = arith.constant 0 : index
    %18 = vector.load %arg4[%c2, %c0_8] : memref<12x256xf32, #tpu.memory_space<vmem>>, vector<1x256xf32>
    %19 = vector.broadcast %17 : vector<16x1xf32> to vector<16x256xf32>
    %20 = vector.broadcast %18 : vector<1x256xf32> to vector<16x256xf32>
    %21 = arith.mulf %19, %20 : vector<16x256xf32>
    %22 = arith.addf %16, %21 : vector<16x256xf32>
    %23 = vector.extract_strided_slice %0 {offsets = [0, 3], sizes = [16, 1], strides = [1, 1]} : vector<16x4xf32> to vector<16x1xf32>
    %c3 = arith.constant 3 : index
    %c0_9 = arith.constant 0 : index
    %24 = vector.load %arg4[%c3, %c0_9] : memref<12x256xf32, #tpu.memory_space<vmem>>, vector<1x256xf32>
    %25 = vector.broadcast %23 : vector<16x1xf32> to vector<16x256xf32>
    %26 = vector.broadcast %24 : vector<1x256xf32> to vector<16x256xf32>
    %27 = arith.mulf %25, %26 : vector<16x256xf32>
    %28 = arith.addf %22, %27 : vector<16x256xf32>
    %c4 = arith.constant 4 : index
    %c0_10 = arith.constant 0 : index
    %29 = vector.load %arg4[%c4, %c0_10] : memref<12x256xf32, #tpu.memory_space<vmem>>, vector<1x256xf32>
    %c5 = arith.constant 5 : index
    %c0_11 = arith.constant 0 : index
    %30 = vector.load %arg4[%c5, %c0_11] : memref<12x256xf32, #tpu.memory_space<vmem>>, vector<1x256xf32>
    %cst_12 = arith.constant dense<0.000000e+00> : vector<256xf32>
    %31 = vector.multi_reduction <add>, %28, %cst_12 [0] : vector<16x256xf32> to vector<256xf32>
    %32 = vector.shape_cast %31 : vector<256xf32> to vector<1x256xf32>
    %cst_13 = arith.constant 1.600000e+01 : f32
    %33 = vector.broadcast %cst_13 : f32 to vector<1x256xf32>
    %34 = arith.divf %32, %33 : vector<1x256xf32>
    %35 = arith.mulf %28, %28 : vector<16x256xf32>
    %cst_14 = arith.constant dense<0.000000e+00> : vector<256xf32>
    %36 = vector.multi_reduction <add>, %35, %cst_14 [0] : vector<16x256xf32> to vector<256xf32>
    %37 = vector.shape_cast %36 : vector<256xf32> to vector<1x256xf32>
    %cst_15 = arith.constant 1.600000e+01 : f32
    %38 = vector.broadcast %cst_15 : f32 to vector<1x256xf32>
    %39 = arith.divf %37, %38 : vector<1x256xf32>
    %40 = arith.mulf %34, %34 : vector<1x256xf32>
    %41 = arith.subf %39, %40 : vector<1x256xf32>
    %cst_16 = arith.constant 0.000000e+00 : f32
    %42 = vector.broadcast %cst_16 : f32 to vector<1x256xf32>
    %43 = arith.maximumf %41, %42 : vector<1x256xf32>
    %cst_17 = arith.constant 9.99999974E-6 : f32
    %44 = vector.broadcast %cst_17 : f32 to vector<1x256xf32>
    %45 = arith.addf %43, %44 : vector<1x256xf32>
    %46 = math.rsqrt %45 : vector<1x256xf32>
    %47 = arith.mulf %29, %46 : vector<1x256xf32>
    %48 = arith.mulf %34, %47 : vector<1x256xf32>
    %49 = arith.subf %30, %48 : vector<1x256xf32>
    %50 = vector.broadcast %47 : vector<1x256xf32> to vector<16x256xf32>
    %51 = arith.mulf %28, %50 : vector<16x256xf32>
    %52 = vector.broadcast %49 : vector<1x256xf32> to vector<16x256xf32>
    %53 = arith.addf %51, %52 : vector<16x256xf32>
    %cst_18 = arith.constant 0.000000e+00 : f32
    %54 = vector.broadcast %cst_18 : f32 to vector<16x256xf32>
    %55 = arith.maximumf %53, %54 : vector<16x256xf32>
    %56 = arith.truncf %55 : vector<16x256xf32> to vector<16x256xbf16>
    %c0_19 = arith.constant 0 : index
    %c0_20 = arith.constant 0 : index
    %57 = vector.load %arg3[%c0_19, %c0_20] : memref<384x128xbf16, #tpu.memory_space<vmem>>, vector<256x128xbf16>
    %cst_21 = arith.constant dense<0.000000e+00> : vector<16x128xf32>
    %58 = tpu.matmul %56, %57, %cst_21 {dimension_numbers = #tpu.dot_dimension_numbers<[1], [0], [0], [1], [0, 0, 1, 1], [], []>} : vector<16x256xbf16>, vector<256x128xbf16>, vector<16x128xf32> -> vector<16x128xf32>
    %c6 = arith.constant 6 : index
    %c0_22 = arith.constant 0 : index
    %59 = vector.load %arg4[%c6, %c0_22] : memref<12x256xf32, #tpu.memory_space<vmem>>, vector<1x128xf32>
    %c7 = arith.constant 7 : index
    %c0_23 = arith.constant 0 : index
    %60 = vector.load %arg4[%c7, %c0_23] : memref<12x256xf32, #tpu.memory_space<vmem>>, vector<1x128xf32>
    %cst_24 = arith.constant dense<0.000000e+00> : vector<128xf32>
    %61 = vector.multi_reduction <add>, %58, %cst_24 [0] : vector<16x128xf32> to vector<128xf32>
    %62 = vector.shape_cast %61 : vector<128xf32> to vector<1x128xf32>
    %cst_25 = arith.constant 1.600000e+01 : f32
    %63 = vector.broadcast %cst_25 : f32 to vector<1x128xf32>
    %64 = arith.divf %62, %63 : vector<1x128xf32>
    %65 = arith.mulf %58, %58 : vector<16x128xf32>
    %cst_26 = arith.constant dense<0.000000e+00> : vector<128xf32>
    %66 = vector.multi_reduction <add>, %65, %cst_26 [0] : vector<16x128xf32> to vector<128xf32>
    %67 = vector.shape_cast %66 : vector<128xf32> to vector<1x128xf32>
    %cst_27 = arith.constant 1.600000e+01 : f32
    %68 = vector.broadcast %cst_27 : f32 to vector<1x128xf32>
    %69 = arith.divf %67, %68 : vector<1x128xf32>
    %70 = arith.mulf %64, %64 : vector<1x128xf32>
    %71 = arith.subf %69, %70 : vector<1x128xf32>
    %cst_28 = arith.constant 0.000000e+00 : f32
    %72 = vector.broadcast %cst_28 : f32 to vector<1x128xf32>
    %73 = arith.maximumf %71, %72 : vector<1x128xf32>
    %cst_29 = arith.constant 9.99999974E-6 : f32
    %74 = vector.broadcast %cst_29 : f32 to vector<1x128xf32>
    %75 = arith.addf %73, %74 : vector<1x128xf32>
    %76 = math.rsqrt %75 : vector<1x128xf32>
    %77 = arith.mulf %59, %76 : vector<1x128xf32>
    %78 = arith.mulf %64, %77 : vector<1x128xf32>
    %79 = arith.subf %60, %78 : vector<1x128xf32>
    %80 = vector.broadcast %77 : vector<1x128xf32> to vector<16x128xf32>
    %81 = arith.mulf %58, %80 : vector<16x128xf32>
    %82 = vector.broadcast %79 : vector<1x128xf32> to vector<16x128xf32>
    %83 = arith.addf %81, %82 : vector<16x128xf32>
    %cst_30 = arith.constant 0.000000e+00 : f32
    %84 = vector.broadcast %cst_30 : f32 to vector<16x128xf32>
    %85 = arith.maximumf %83, %84 : vector<16x128xf32>
    %86 = arith.truncf %85 : vector<16x128xf32> to vector<16x128xbf16>
    %c256 = arith.constant 256 : index
    %c0_31 = arith.constant 0 : index
    %87 = vector.load %arg3[%c256, %c0_31] : memref<384x128xbf16, #tpu.memory_space<vmem>>, vector<128x128xbf16>
    %cst_32 = arith.constant dense<0.000000e+00> : vector<16x128xf32>
    %88 = tpu.matmul %86, %87, %cst_32 {dimension_numbers = #tpu.dot_dimension_numbers<[1], [0], [0], [1], [0, 0, 1, 1], [], []>} : vector<16x128xbf16>, vector<128x128xbf16>, vector<16x128xf32> -> vector<16x128xf32>
    %c8 = arith.constant 8 : index
    %c0_33 = arith.constant 0 : index
    %89 = vector.load %arg4[%c8, %c0_33] : memref<12x256xf32, #tpu.memory_space<vmem>>, vector<1x128xf32>
    %c9 = arith.constant 9 : index
    %c0_34 = arith.constant 0 : index
    %90 = vector.load %arg4[%c9, %c0_34] : memref<12x256xf32, #tpu.memory_space<vmem>>, vector<1x128xf32>
    %cst_35 = arith.constant dense<0.000000e+00> : vector<128xf32>
    %91 = vector.multi_reduction <add>, %88, %cst_35 [0] : vector<16x128xf32> to vector<128xf32>
    %92 = vector.shape_cast %91 : vector<128xf32> to vector<1x128xf32>
    %cst_36 = arith.constant 1.600000e+01 : f32
    %93 = vector.broadcast %cst_36 : f32 to vector<1x128xf32>
    %94 = arith.divf %92, %93 : vector<1x128xf32>
    %95 = arith.mulf %88, %88 : vector<16x128xf32>
    %cst_37 = arith.constant dense<0.000000e+00> : vector<128xf32>
    %96 = vector.multi_reduction <add>, %95, %cst_37 [0] : vector<16x128xf32> to vector<128xf32>
    %97 = vector.shape_cast %96 : vector<128xf32> to vector<1x128xf32>
    %cst_38 = arith.constant 1.600000e+01 : f32
    %98 = vector.broadcast %cst_38 : f32 to vector<1x128xf32>
    %99 = arith.divf %97, %98 : vector<1x128xf32>
    %100 = arith.mulf %94, %94 : vector<1x128xf32>
    %101 = arith.subf %99, %100 : vector<1x128xf32>
    %cst_39 = arith.constant 0.000000e+00 : f32
    %102 = vector.broadcast %cst_39 : f32 to vector<1x128xf32>
    %103 = arith.maximumf %101, %102 : vector<1x128xf32>
    %cst_40 = arith.constant 9.99999974E-6 : f32
    %104 = vector.broadcast %cst_40 : f32 to vector<1x128xf32>
    %105 = arith.addf %103, %104 : vector<1x128xf32>
    %106 = math.rsqrt %105 : vector<1x128xf32>
    %107 = arith.mulf %89, %106 : vector<1x128xf32>
    %108 = arith.mulf %94, %107 : vector<1x128xf32>
    %109 = arith.subf %90, %108 : vector<1x128xf32>
    %110 = vector.broadcast %107 : vector<1x128xf32> to vector<16x128xf32>
    %111 = arith.mulf %88, %110 : vector<16x128xf32>
    %112 = vector.broadcast %109 : vector<1x128xf32> to vector<16x128xf32>
    %113 = arith.addf %111, %112 : vector<16x128xf32>
    %cst_41 = arith.constant 0.000000e+00 : f32
    %114 = vector.broadcast %cst_41 : f32 to vector<16x128xf32>
    %115 = arith.maximumf %113, %114 : vector<16x128xf32>
    %c10 = arith.constant 10 : index
    %c0_42 = arith.constant 0 : index
    %116 = vector.load %arg4[%c10, %c0_42] : memref<12x256xf32, #tpu.memory_space<vmem>>, vector<1x128xf32>
    %117 = vector.broadcast %116 : vector<1x128xf32> to vector<16x128xf32>
    %118 = arith.mulf %115, %117 : vector<16x128xf32>
    %cst_43 = arith.constant dense<0.000000e+00> : vector<16xf32>
    %119 = vector.multi_reduction <add>, %118, %cst_43 [1] : vector<16x128xf32> to vector<16xf32>
    %120 = vector.shape_cast %119 : vector<16xf32> to vector<16x1xf32>
    %c11 = arith.constant 11 : index
    %c0_44 = arith.constant 0 : index
    %121 = vector.load %arg4[%c11, %c0_44] : memref<12x256xf32, #tpu.memory_space<vmem>>, vector<1x1xf32>
    %122 = vector.broadcast %121 : vector<1x1xf32> to vector<16x1xf32>
    %123 = arith.addf %120, %122 : vector<16x1xf32>
    %c0_45 = arith.constant 0 : index
    %c0_46 = arith.constant 0 : index
    %124 = vector.load %arg5[%c0_45, %c0_46] : memref<16x1xf32, #tpu.memory_space<vmem>>, vector<16x1xf32>
    tpu.vector_store %arg5[%c0_45, %c0_46], %123 {strides = array<i32>} : memref<16x1xf32, #tpu.memory_space<vmem>>, vector<16x1xf32>,
    return
  }
}

</mosaic_0001>

<llo_original>
// kernel: tpu_custom_call.1
$region0: #{tpu_custom_call.1}
  #allocation0 [shape = 'u32[]', space=smem, size = 0x4, offset = 0x4, fixed_abs, tag = 'smem constant byte address 0x4 - core index']
  #allocation1 [shape = 'u32[144,128]{1,0:T(1,128)}', space=vmem, size = 0x12000, scoped, tag = 'internal scratch']
  %s0 = inlined_call_operand.hbm [shape: f32[16,16], index: 0, kind: input, shape index: {}]
  %s1 = inlined_call_operand.vmem [shape: f32[16,4], index: 1, kind: input, shape index: {}]
  %s2 = inlined_call_operand.hbm [shape: bf16[16,256], index: 2, kind: input, shape index: {}]
  %s3 = inlined_call_operand.hbm [shape: bf16[384,128], index: 3, kind: input, shape index: {}]
  %s4 = inlined_call_operand.vmem [shape: f32[12,256], index: 4, kind: input, shape index: {}]
  %s5 = inlined_call_operand.vmem [shape: f32[16,1], index: 5, kind: output, shape index: {}]
  %s6 = sld [smem:[#allocation0]]
  $region42: #{tpu_custom_call.1} parent=0
    _
  %s8 = ssub.s32 1, %s6
  %s9 = scalar_select 0, %s8, %s6
  $region1: #{tpu_custom_call.1} parent=0
    #allocation2 [shape = 'u8[8192]{0}', space=vmem, size = 0x2000, scoped, tag = 'input window, operand 0, single buffered']
    #allocation3 [shape = 's32[1]{0}', space=sflag, size = 0x4, scoped, tag = 'scoped memory for tpu_custom_call.1']
    #allocation4 [shape = 'u8[8192]{0}', space=vmem, size = 0x2000, scoped, tag = 'input window, operand 2, single buffered']
    #allocation5 [shape = 's32[1]{0}', space=sflag, size = 0x4, scoped, tag = 'scoped memory for tpu_custom_call.1']
    #allocation6 [shape = 'u8[98304]{0}', space=vmem, size = 0x18000, scoped, tag = 'input window, operand 3, single buffered']
    %10 = vsyncpa [#allocation3], 0
    %11 = vsyncpa [#allocation5], 0
    // Predicated region
    $region2: #{tpu_custom_call.1} parent=1 // pred_check
      _
    $region3: #{tpu_custom_call.1} parent=1 // pred_check_branch
      %13 = sbr.rel (0) target = $region5
    $region4: #{tpu_custom_call.1} parent=1 // pred_region
      %s15 = ssub.s32 256, 256
      %16 = vsyncadd [#allocation3], %s15
      %s17 = sshll.u32 [#allocation2], 4
      %s18 = int_to_ptr.vmem [resolvable:$true] %s17
      %23 = dma.hbm_to_vmem [thread:$0]  %s0, 256, %s18, [#allocation3], 128, 128, 8
    $region5: #{tpu_custom_call.1} parent=1 // pred_fallthru
      _
    // Predicated region
    $region6: #{tpu_custom_call.1} parent=1 // pred_check
      _
    $region7: #{tpu_custom_call.1} parent=1 // pred_check_branch
      %25 = sbr.rel (0) target = $region9
    $region8: #{tpu_custom_call.1} parent=1 // pred_region
      _
    $region9: #{tpu_custom_call.1} parent=1 // pred_fallthru
      _
    // Predicated region
    $region10: #{tpu_custom_call.1} parent=1 // pred_check
      _
    $region11: #{tpu_custom_call.1} parent=1 // pred_check_branch
      %27 = sbr.rel (0) target = $region13
    $region12: #{tpu_custom_call.1} parent=1 // pred_region
      %s29 = ssub.s32 256, 256
      %30 = vsyncadd [#allocation5], %s29
      %s31 = sshll.u32 [#allocation4], 4
      %s32 = int_to_ptr.vmem [resolvable:$true] %s31
      %37 = dma.hbm_to_vmem [thread:$0]  %s2, 256, %s32, [#allocation5], 128, 128, 8
    $region13: #{tpu_custom_call.1} parent=1 // pred_fallthru
      _
    // Predicated region
    $region14: #{tpu_custom_call.1} parent=1 // pred_check
      _
    $region15: #{tpu_custom_call.1} parent=1 // pred_check_branch
      %39 = sbr.rel (0) target = $region17
    $region16: #{tpu_custom_call.1} parent=1 // pred_region
      %s41 = ssub.s32 3072, 3072
      %42 = vsyncadd [#allocation5], %s41
      %s43 = sshll.u32 [#allocation6], 4
      %s44 = int_to_ptr.vmem [resolvable:$true] %s43
      %49 = dma.hbm_to_vmem [thread:$0]  %s3, 3072, %s44, [#allocation5], 64, 64, 4
    $region17: #{tpu_custom_call.1} parent=1 // pred_fallthru
      _
    // Predicated region
    $region18: #{tpu_custom_call.1} parent=1 // pred_check
      _
    $region19: #{tpu_custom_call.1} parent=1 // pred_check_branch
      %51 = sbr.rel (0) target = $region21
    $region20: #{tpu_custom_call.1} parent=1 // pred_region
      _
    $region21: #{tpu_custom_call.1} parent=1 // pred_fallthru
      _
    // Predicated region
    $region22: #{tpu_custom_call.1} parent=1 // pred_check
      _
    $region23: #{tpu_custom_call.1} parent=1 // pred_check_branch
      %53 = sbr.rel (0) target = $region25
    $region24: #{tpu_custom_call.1} parent=1 // pred_region
      %54 = dma.done [#allocation3], 256
    $region25: #{tpu_custom_call.1} parent=1 // pred_fallthru
      _
    // Predicated region
    $region26: #{tpu_custom_call.1} parent=1 // pred_check
      _
    $region27: #{tpu_custom_call.1} parent=1 // pred_check_branch
      %56 = sbr.rel (0) target = $region29
    $region28: #{tpu_custom_call.1} parent=1 // pred_region
      %57 = dma.done [#allocation5], 256
    $region29: #{tpu_custom_call.1} parent=1 // pred_fallthru
      _
    // Predicated region
    $region30: #{tpu_custom_call.1} parent=1 // pred_check
      _
    $region31: #{tpu_custom_call.1} parent=1 // pred_check_branch
      %59 = sbr.rel (0) target = $region33
    $region32: #{tpu_custom_call.1} parent=1 // pred_region
      %60 = dma.done [#allocation5], 3072
    $region33: #{tpu_custom_call.1} parent=1 // pred_fallthru
      _
    %v62 = vld [vmem:[%s1] sm:$0xff]
    %v63 = vld [vmem:[%s1 + $0x8] sm:$0xff]
    %v64 = vld [vmem:[#allocation2] sm:$0xff]
    %v65 = vld [vmem:[#allocation2 + $0x8] sm:$0xff]
    %v66 = vpack.c.bf16 %v65, %v64
    %v67 = vld [vmem:[#allocation4] sm:$0xff]
    %v68 = vld [vmem:[#allocation4 + $0x8] sm:$0xff]
    %v69 = vld [vmem:[%s4] ss:$8 sm:$0x3]
    %71 = vset.pattern.permute.xlu0 0
    %72 = vperm.xlu0 %71, %v62
    %v73 = vpop.permute.xlu0 %72
    %76 = vset.pattern.permute.xlu0 0
    %77 = vperm.xlu0 %76, %v63
    %v78 = vpop.permute.xlu0 %77
    %v81 = vlaneseq
    %v82 = vshrl.u32 %v81, 7
    %v83 = vsub.s32 0, %v82
    %v84 = vrot.slane %v69, %v83
    %v85 = vlaneseq
    %v86 = vshrl.u32 %v85, 7
    %v87 = vsub.s32 1, %v86
    %v88 = vrot.slane %v69, %v87
    %v91 = vmul.f32 %v73, %v84
    %v92 = vmul.f32 %v73, %v88
    %v93 = vmul.f32 %v78, %v84
    %v94 = vmul.f32 %v78, %v88
    %v97 = vunpack.c.l.b16 %v67
    %v98 = vunpack.c.h.b16 %v67
    %v99 = vunpack.c.l.b16 %v68
    %v100 = vunpack.c.h.b16 %v68
    %v101 = vpack.c.b16 %v99, %v97
    %v102 = vpack.c.b16 %v100, %v98
    %vm105 = vcmask 130048
    %v107 = vsel %vm105, %v66, 0
    %109 = vmatprep.subr.bf16.mxu0 %v102
    %110 = vmatpush1.bf16.msra.mxu0 %v101
    %111 = vmatprep.subr.bf16.mxu0 0
    %112 = vmatpush1.bf16.msra.mxu0 0
    %113 = vmatprep.subr.bf16.mxu0 0
    %114 = vmatpush1.bf16.msra.mxu0 0
    %115 = vmatprep.subr.bf16.mxu0 0
    %116 = vmatpush1.bf16.msra.mxu0 0
    %117 = vmatprep.subr.bf16.mxu0 0
    %118 = vmatpush1.bf16.msra.mxu0 0
    %119 = vmatprep.subr.bf16.mxu0 0
    %120 = vmatpush1.bf16.msra.mxu0 0
    %121 = vmatprep.subr.bf16.mxu0 0
    %122 = vmatpush1.bf16.msra.mxu0 0
    %123 = vmatprep.subr.bf16.mxu0 0
    %124 = vmatpush1.bf16.msra.mxu0 0
    %125 = vmatprep.subr.bf16.mxu0 0
    %126 = vmatpush1.bf16.msra.mxu0 0
    %127 = vmatprep.subr.bf16.mxu0 0
    %128 = vmatpush1.bf16.msra.mxu0 0
    %129 = vmatprep.subr.bf16.mxu0 0
    %130 = vmatpush1.bf16.msra.mxu0 0
    %131 = vmatprep.subr.bf16.mxu0 0
    %132 = vmatpush1.bf16.msra.mxu0 0
    %133 = vmatprep.subr.bf16.mxu0 0
    %134 = vmatpush1.bf16.msra.mxu0 0
    %135 = vmatprep.subr.bf16.mxu0 0
    %136 = vmatpush1.bf16.msra.mxu0 0
    %137 = vmatprep.subr.bf16.mxu0 0
    %138 = vmatpush1.bf16.msra.mxu0 0
    %139 = vmatprep.subr.bf16.mxu0 0
    %140 = vmatpush1.bf16.msra.mxu0 0
    %141 = vmatprep.mubr.bf16.mxu0 0
    %142 = vmatmul.mubr.bf16.gmra.mrb[0].mxu0 %v107
    %v143 = vpop.f32.mrb[0].mxu0
    %v144 = vadd.f32 %v91, %v143
    %v145 = vpop.f32.mrb[0].mxu0
    %v146 = vadd.f32 %v92, %v145
    %v147 = vpop.f32.mrb[0].mxu0
    %v148 = vadd.f32 %v93, %v147
    %v149 = vpop.f32.mrb[0].mxu0
    %v150 = vadd.f32 %v94, %v149
    %151 = vdwg.mxu0
    %s152 = scalar_lea.vmem %s4, 1
    %v153 = vld [vmem:[%s152] ss:$8 sm:$0x3]
    %154 = vset.pattern.permute.xlu0 1
    %155 = vperm.xlu0 %154, %v62
    %v156 = vpop.permute.xlu0 %155
    %158 = vset.pattern.permute.xlu0 1
    %159 = vperm.xlu0 %158, %v63
    %v160 = vpop.permute.xlu0 %159
    %v163 = vlaneseq
    %v164 = vshrl.u32 %v163, 7
    %v165 = vsub.s32 0, %v164
    %v166 = vrot.slane %v153, %v165
    %v167 = vlaneseq
    %v168 = vshrl.u32 %v167, 7
    %v169 = vsub.s32 1, %v168
    %v170 = vrot.slane %v153, %v169
    %v173 = vmul.f32 %v156, %v166
    %v174 = vmul.f32 %v156, %v170
    %v175 = vmul.f32 %v160, %v166
    %v176 = vmul.f32 %v160, %v170
    %v177 = vadd.f32 %v144, %v173
    %v178 = vadd.f32 %v146, %v174
    %v179 = vadd.f32 %v148, %v175
    %v180 = vadd.f32 %v150, %v176
    %s181 = scalar_lea.vmem %s4, 2
    %v182 = vld [vmem:[%s181] ss:$8 sm:$0x3]
    %183 = vset.pattern.permute.xlu0 2
    %184 = vperm.xlu0 %183, %v62
    %v185 = vpop.permute.xlu0 %184
    %187 = vset.pattern.permute.xlu0 2
    %188 = vperm.xlu0 %187, %v63
    %v189 = vpop.permute.xlu0 %188
    %v192 = vlaneseq
    %v193 = vshrl.u32 %v192, 7
    %v194 = vsub.s32 0, %v193
    %v195 = vrot.slane %v182, %v194
    %v196 = vlaneseq
    %v197 = vshrl.u32 %v196, 7
    %v198 = vsub.s32 1, %v197
    %v199 = vrot.slane %v182, %v198
    %v202 = vmul.f32 %v185, %v195
    %v203 = vmul.f32 %v185, %v199
    %v204 = vmul.f32 %v189, %v195
    %v205 = vmul.f32 %v189, %v199
    %v206 = vadd.f32 %v177, %v202
    %v207 = vadd.f32 %v178, %v203
    %v208 = vadd.f32 %v179, %v204
    %v209 = vadd.f32 %v180, %v205
    %s210 = scalar_lea.vmem %s4, 3
    %v211 = vld [vmem:[%s210] ss:$8 sm:$0x3]
    %212 = vset.pattern.permute.xlu0 3
    %213 = vperm.xlu0 %212, %v62
    %v214 = vpop.permute.xlu0 %213
    %216 = vset.pattern.permute.xlu0 3
    %217 = vperm.xlu0 %216, %v63
    %v218 = vpop.permute.xlu0 %217
    %v221 = vlaneseq
    %v222 = vshrl.u32 %v221, 7
    %v223 = vsub.s32 0, %v222
    %v224 = vrot.slane %v211, %v223
    %v225 = vlaneseq
    %v226 = vshrl.u32 %v225, 7
    %v227 = vsub.s32 1, %v226
    %v228 = vrot.slane %v211, %v227
    %v231 = vmul.f32 %v214, %v224
    %v232 = vmul.f32 %v214, %v228
    %v233 = vmul.f32 %v218, %v224
    %v234 = vmul.f32 %v218, %v228
    %v235 = vadd.f32 %v206, %v231
    %v236 = vadd.f32 %v207, %v232
    %v237 = vadd.f32 %v208, %v233
    %v238 = vadd.f32 %v209, %v234
    %s239 = scalar_lea.vmem %s4, 4
    %v240 = vld [vmem:[%s239] ss:$8 sm:$0x3]
    %s241 = scalar_lea.vmem %s4, 5
    %v242 = vld [vmem:[%s241] ss:$8 sm:$0x3]
    %v243 = vadd.f32 %v235, %v237
    %v244 = vrot.slane %v243, 4
    %v245 = vadd.f32 %v243, %v244
    %v246 = vrot.slane %v245, 2
    %v247 = vadd.f32 %v245, %v246
    %v248 = vrot.slane %v247, 1
    %v249 = vadd.f32 %v247, %v248
    %v250 = vadd.f32 %v236, %v238
    %v251 = vrot.slane %v250, 4
    %v252 = vadd.f32 %v250, %v251
    %v253 = vrot.slane %v252, 2
    %v254 = vadd.f32 %v252, %v253
    %v255 = vrot.slane %v254, 1
    %v256 = vadd.f32 %v254, %v255
    %v257 = vrcp.pop 16.0
    %v258 = vmul.f32 %v249, %v257
    %v259 = vmul.f32 %v256, %v257
    %v260 = vmul.f32 %v235, %v235
    %v261 = vmul.f32 %v236, %v236
    %v262 = vmul.f32 %v237, %v237
    %v263 = vmul.f32 %v238, %v238
    %v264 = vadd.f32 %v260, %v262
    %v265 = vrot.slane %v264, 4
    %v266 = vadd.f32 %v264, %v265
    %v267 = vrot.slane %v266, 2
    %v268 = vadd.f32 %v266, %v267
    %v269 = vrot.slane %v268, 1
    %v270 = vadd.f32 %v268, %v269
    %v271 = vadd.f32 %v261, %v263
    %v272 = vrot.slane %v271, 4
    %v273 = vadd.f32 %v271, %v272
    %v274 = vrot.slane %v273, 2
    %v275 = vadd.f32 %v273, %v274
    %v276 = vrot.slane %v275, 1
    %v277 = vadd.f32 %v275, %v276
    %v278 = vmul.f32 %v270, %v257
    %v279 = vmul.f32 %v277, %v257
    %v280 = vmul.f32 %v258, %v258
    %v281 = vmul.f32 %v259, %v259
    %v282 = vsub.f32 %v278, %v280
    %v283 = vsub.f32 %v279, %v281
    %v284 = vmax.f32 %v282, 0.0
    %v285 = vmax.f32 %v283, 0.0
    %v286 = vadd.f32 %v284, 1e-05
    %v287 = vadd.f32 %v285, 1e-05
    %v288 = vrsqrt.pop %v286
    %v289 = vrsqrt.pop %v287
    %v292 = vcombine.low %v288, %v289
    %v294 = vunpack.c.l.s4 1966171168
    %v295 = vunpack.c.0.s8 %v294
    %v296 = vlaneseq
    %v297 = vshrl.u32 %v296, 7
    %v298 = vsub.s32 %v295, %v297
    %v299 = vrot.slane %v292, %v298
    %v301 = vunpack.c.l.s4 1966171168
    %v302 = vunpack.c.0.s8 %v301
    %v303 = vlaneseq
    %v304 = vshrl.u32 %v303, 7
    %v305 = vsub.s32 %v302, %v304
    %v306 = vrot.slane %v299, %v305
    %v308 = vmul.f32 %v240, %v306
    %v310 = vlaneseq
    %v311 = vshrl.u32 %v310, 7
    %v312 = vsub.s32 0, %v311
    %v313 = vrot.slane %v308, %v312
    %v314 = vlaneseq
    %v315 = vshrl.u32 %v314, 7
    %v316 = vsub.s32 1, %v315
    %v317 = vrot.slane %v308, %v316
    %v320 = vmul.f32 %v258, %v313
    %v321 = vmul.f32 %v259, %v317
    %v324 = vcombine.low %v320, %v321
    %v326 = vunpack.c.l.s4 1966171168
    %v327 = vunpack.c.0.s8 %v326
    %v328 = vlaneseq
    %v329 = vshrl.u32 %v328, 7
    %v330 = vsub.s32 %v327, %v329
    %v331 = vrot.slane %v324, %v330
    %v333 = vunpack.c.l.s4 1966171168
    %v334 = vunpack.c.0.s8 %v333
    %v335 = vlaneseq
    %v336 = vshrl.u32 %v335, 7
    %v337 = vsub.s32 %v334, %v336
    %v338 = vrot.slane %v331, %v337
    %v340 = vsub.f32 %v242, %v338
    %v341 = vmul.f32 %v235, %v313
    %v342 = vmul.f32 %v236, %v317
    %v343 = vmul.f32 %v237, %v313
    %v344 = vmul.f32 %v238, %v317
    %v346 = vlaneseq
    %v347 = vshrl.u32 %v346, 7
    %v348 = vsub.s32 0, %v347
    %v349 = vrot.slane %v340, %v348
    %v350 = vlaneseq
    %v351 = vshrl.u32 %v350, 7
    %v352 = vsub.s32 1, %v351
    %v353 = vrot.slane %v340, %v352
    %v356 = vadd.f32 %v341, %v349
    %v357 = vadd.f32 %v342, %v353
    %v358 = vadd.f32 %v343, %v349
    %v359 = vadd.f32 %v344, %v353
    %v360 = vmax.f32 %v356, 0.0
    %v361 = vmax.f32 %v357, 0.0
    %v362 = vmax.f32 %v358, 0.0
    %v363 = vmax.f32 %v359, 0.0
    %v364 = vpack.c.bf16 %v362, %v360
    %v365 = vpack.c.bf16 %v363, %v361
    %v366 = vld [vmem:[#allocation6] sm:$0xf]
    %v367 = vld [vmem:[#allocation6 + $0x4] sm:$0xf]
    %v368 = vld [vmem:[#allocation6 + $0x8] sm:$0xf]
    %v369 = vld [vmem:[#allocation6 + $0xc] sm:$0xf]
    %v370 = vld [vmem:[#allocation6 + $0x10] sm:$0xf]
    %v371 = vld [vmem:[#allocation6 + $0x14] sm:$0xf]
    %v372 = vld [vmem:[#allocation6 + $0x18] sm:$0xf]
    %v373 = vld [vmem:[#allocation6 + $0x1c] sm:$0xf]
    %v374 = vld [vmem:[#allocation6 + $0x20] sm:$0xf]
    %v375 = vld [vmem:[#allocation6 + $0x24] sm:$0xf]
    %v376 = vld [vmem:[#allocation6 + $0x28] sm:$0xf]
    %v377 = vld [vmem:[#allocation6 + $0x2c] sm:$0xf]
    %v378 = vld [vmem:[#allocation6 + $0x30] sm:$0xf]
    %v379 = vld [vmem:[#allocation6 + $0x34] sm:$0xf]
    %v380 = vld [vmem:[#allocation6 + $0x38] sm:$0xf]
    %v381 = vld [vmem:[#allocation6 + $0x3c] sm:$0xf]
    %v382 = vld [vmem:[#allocation6 + $0x40] sm:$0xf]
    %v383 = vld [vmem:[#allocation6 + $0x44] sm:$0xf]
    %v384 = vld [vmem:[#allocation6 + $0x48] sm:$0xf]
    %v385 = vld [vmem:[#allocation6 + $0x4c] sm:$0xf]
    %v386 = vld [vmem:[#allocation6 + $0x50] sm:$0xf]
    %v387 = vld [vmem:[#allocation6 + $0x54] sm:$0xf]
    %v388 = vld [vmem:[#allocation6 + $0x58] sm:$0xf]
    %v389 = vld [vmem:[#allocation6 + $0x5c] sm:$0xf]
    %v390 = vld [vmem:[#allocation6 + $0x60] sm:$0xf]
    %v391 = vld [vmem:[#allocation6 + $0x64] sm:$0xf]
    %v392 = vld [vmem:[#allocation6 + $0x68] sm:$0xf]
    %v393 = vld [vmem:[#allocation6 + $0x6c] sm:$0xf]
    %v394 = vld [vmem:[#allocation6 + $0x70] sm:$0xf]
    %v395 = vld [vmem:[#allocation6 + $0x74] sm:$0xf]
    %v396 = vld [vmem:[#allocation6 + $0x78] sm:$0xf]
    %v397 = vld [vmem:[#allocation6 + $0x7c] sm:$0xf]
    %v430 = vunpack.c.l.b16 %v366
    %v431 = vunpack.c.l.b16 %v367
    %v432 = vunpack.c.l.b16 %v368
    %v433 = vunpack.c.l.b16 %v369
    %v434 = vunpack.c.l.b16 %v370
    %v435 = vunpack.c.l.b16 %v371
    %v436 = vunpack.c.l.b16 %v372
    %v437 = vunpack.c.l.b16 %v373
    %v438 = vunpack.c.l.b16 %v374
    %v439 = vunpack.c.l.b16 %v375
    %v440 = vunpack.c.l.b16 %v376
    %v441 = vunpack.c.l.b16 %v377
    %v442 = vunpack.c.l.b16 %v378
    %v443 = vunpack.c.l.b16 %v379
    %v444 = vunpack.c.l.b16 %v380
    %v445 = vunpack.c.l.b16 %v381
    %v446 = vunpack.c.l.b16 %v382
    %v447 = vunpack.c.l.b16 %v383
    %v448 = vunpack.c.l.b16 %v384
    %v449 = vunpack.c.l.b16 %v385
    %v450 = vunpack.c.l.b16 %v386
    %v451 = vunpack.c.l.b16 %v387
    %v452 = vunpack.c.l.b16 %v388
    %v453 = vunpack.c.l.b16 %v389
    %v454 = vunpack.c.l.b16 %v390
    %v455 = vunpack.c.l.b16 %v391
    %v456 = vunpack.c.l.b16 %v392
    %v457 = vunpack.c.l.b16 %v393
    %v458 = vunpack.c.l.b16 %v394
    %v459 = vunpack.c.l.b16 %v395
    %v460 = vunpack.c.l.b16 %v396
    %v461 = vunpack.c.l.b16 %v397
    %v462 = vpack.c.b16 %v431, %v430
    %v463 = vpack.c.b16 %v433, %v432
    %v464 = vpack.c.b16 %v435, %v434
    %v465 = vpack.c.b16 %v437, %v436
    %v466 = vpack.c.b16 %v439, %v438
    %v467 = vpack.c.b16 %v441, %v440
    %v468 = vpack.c.b16 %v443, %v442
    %v469 = vpack.c.b16 %v445, %v444
    %v470 = vpack.c.b16 %v447, %v446
    %v471 = vpack.c.b16 %v449, %v448
    %v472 = vpack.c.b16 %v451, %v450
    %v473 = vpack.c.b16 %v453, %v452
    %v474 = vpack.c.b16 %v455, %v454
    %v475 = vpack.c.b16 %v457, %v456
    %v476 = vpack.c.b16 %v459, %v458
    %v477 = vpack.c.b16 %v461, %v460
    %494 = vmatprep.subr.bf16.mxu0 0
    %495 = vmatpush1.bf16.msra.mxu0 %v462
    %496 = vmatprep.subr.bf16.mxu0 0
    %497 = vmatpush1.bf16.msra.mxu0 %v463
    %498 = vmatprep.subr.bf16.mxu0 0
    %499 = vmatpush1.bf16.msra.mxu0 %v464
    %500 = vmatprep.subr.bf16.mxu0 0
    %501 = vmatpush1.bf16.msra.mxu0 %v465
    %502 = vmatprep.subr.bf16.mxu0 0
    %503 = vmatpush1.bf16.msra.mxu0 %v466
    %504 = vmatprep.subr.bf16.mxu0 0
    %505 = vmatpush1.bf16.msra.mxu0 %v467
    %506 = vmatprep.subr.bf16.mxu0 0
    %507 = vmatpush1.bf16.msra.mxu0 %v468
    %508 = vmatprep.subr.bf16.mxu0 0
    %509 = vmatpush1.bf16.msra.mxu0 %v469
    %510 = vmatprep.subr.bf16.mxu0 0
    %511 = vmatpush1.bf16.msra.mxu0 %v470
    %512 = vmatprep.subr.bf16.mxu0 0
    %513 = vmatpush1.bf16.msra.mxu0 %v471
    %514 = vmatprep.subr.bf16.mxu0 0
    %515 = vmatpush1.bf16.msra.mxu0 %v472
    %516 = vmatprep.subr.bf16.mxu0 0
    %517 = vmatpush1.bf16.msra.mxu0 %v473
    %518 = vmatprep.subr.bf16.mxu0 0
    %519 = vmatpush1.bf16.msra.mxu0 %v474
    %520 = vmatprep.subr.bf16.mxu0 0
    %521 = vmatpush1.bf16.msra.mxu0 %v475
    %522 = vmatprep.subr.bf16.mxu0 0
    %523 = vmatpush1.bf16.msra.mxu0 %v476
    %524 = vmatprep.subr.bf16.mxu0 0
    %525 = vmatpush1.bf16.msra.mxu0 %v477
    %526 = vmatprep.mubr.bf16.mxu0 %v365
    %527 = vmatmul.mubr.bf16.gmra.mrb[0].mxu0 %v364
    %v528 = vpop.f32.mrb[0].mxu0
    %v529 = vadd.f32 0.0, %v528
    %v530 = vpop.f32.mrb[0].mxu0
    %v531 = vpop.f32.mrb[0].mxu0
    %v532 = vadd.f32 0.0, %v531
    %v533 = vpop.f32.mrb[0].mxu0
    %534 = vdwg.mxu0
    %v535 = vld [vmem:[%s4 + $0x6] ss:$0 sm:$0xff]
    %v536 = vld [vmem:[%s4 + $0x7] ss:$0 sm:$0xff]
    %v537 = vadd.f32 %v529, %v532
    %v538 = vrot.slane %v537, 4
    %v539 = vadd.f32 %v537, %v538
    %v540 = vrot.slane %v539, 2
    %v541 = vadd.f32 %v539, %v540
    %v542 = vrot.slane %v541, 1
    %v543 = vadd.f32 %v541, %v542
    %v544 = vmul.f32 %v543, %v257
    %v545 = vmul.f32 %v529, %v529
    %v546 = vmul.f32 %v532, %v532
    %v547 = vadd.f32 %v545, %v546
    %v548 = vrot.slane %v547, 4
    %v549 = vadd.f32 %v547, %v548
    %v550 = vrot.slane %v549, 2
    %v551 = vadd.f32 %v549, %v550
    %v552 = vrot.slane %v551, 1
    %v553 = vadd.f32 %v551, %v552
    %v554 = vmul.f32 %v553, %v257
    %v555 = vmul.f32 %v544, %v544
    %v556 = vsub.f32 %v554, %v555
    %v557 = vmax.f32 %v556, 0.0
    %v558 = vadd.f32 %v557, 1e-05
    %v559 = vrsqrt.pop %v558
    %v560 = vmul.f32 %v535, %v559
    %v561 = vmul.f32 %v544, %v560
    %v562 = vsub.f32 %v536, %v561
    %v563 = vmul.f32 %v529, %v560
    %v564 = vmul.f32 %v532, %v560
    %v565 = vadd.f32 %v563, %v562
    %v566 = vadd.f32 %v564, %v562
    %v567 = vmax.f32 %v565, 0.0
    %v568 = vmax.f32 %v566, 0.0
    %v569 = vpack.c.bf16 %v568, %v567
    %v570 = vld [vmem:[#allocation6 + $0x80] sm:$0xf]
    %v571 = vld [vmem:[#allocation6 + $0x84] sm:$0xf]
    %v572 = vld [vmem:[#allocation6 + $0x88] sm:$0xf]
    %v573 = vld [vmem:[#allocation6 + $0x8c] sm:$0xf]
    %v574 = vld [vmem:[#allocation6 + $0x90] sm:$0xf]
    %v575 = vld [vmem:[#allocation6 + $0x94] sm:$0xf]
    %v576 = vld [vmem:[#allocation6 + $0x98] sm:$0xf]
    %v577 = vld [vmem:[#allocation6 + $0x9c] sm:$0xf]
    %v578 = vld [vmem:[#allocation6 + $0xa0] sm:$0xf]
    %v579 = vld [vmem:[#allocation6 + $0xa4] sm:$0xf]
    %v580 = vld [vmem:[#allocation6 + $0xa8] sm:$0xf]
    %v581 = vld [vmem:[#allocation6 + $0xac] sm:$0xf]
    %v582 = vld [vmem:[#allocation6 + $0xb0] sm:$0xf]
    %v583 = vld [vmem:[#allocation6 + $0xb4] sm:$0xf]
    %v584 = vld [vmem:[#allocation6 + $0xb8] sm:$0xf]
    %v585 = vld [vmem:[#allocation6 + $0xbc] sm:$0xf]
    %v602 = vunpack.c.l.b16 %v570
    %v603 = vunpack.c.l.b16 %v571
    %v604 = vunpack.c.l.b16 %v572
    %v605 = vunpack.c.l.b16 %v573
    %v606 = vunpack.c.l.b16 %v574
    %v607 = vunpack.c.l.b16 %v575
    %v608 = vunpack.c.l.b16 %v576
    %v609 = vunpack.c.l.b16 %v577
    %v610 = vunpack.c.l.b16 %v578
    %v611 = vunpack.c.l.b16 %v579
    %v612 = vunpack.c.l.b16 %v580
    %v613 = vunpack.c.l.b16 %v581
    %v614 = vunpack.c.l.b16 %v582
    %v615 = vunpack.c.l.b16 %v583
    %v616 = vunpack.c.l.b16 %v584
    %v617 = vunpack.c.l.b16 %v585
    %v618 = vpack.c.b16 %v603, %v602
    %v619 = vpack.c.b16 %v605, %v604
    %v620 = vpack.c.b16 %v607, %v606
    %v621 = vpack.c.b16 %v609, %v608
    %v622 = vpack.c.b16 %v611, %v610
    %v623 = vpack.c.b16 %v613, %v612
    %v624 = vpack.c.b16 %v615, %v614
    %v625 = vpack.c.b16 %v617, %v616
    %634 = vmatprep.subr.bf16.mxu0 0
    %635 = vmatpush1.bf16.msra.mxu0 %v618
    %636 = vmatprep.subr.bf16.mxu0 0
    %637 = vmatpush1.bf16.msra.mxu0 %v619
    %638 = vmatprep.subr.bf16.mxu0 0
    %639 = vmatpush1.bf16.msra.mxu0 %v620
    %640 = vmatprep.subr.bf16.mxu0 0
    %641 = vmatpush1.bf16.msra.mxu0 %v621
    %642 = vmatprep.subr.bf16.mxu0 0
    %643 = vmatpush1.bf16.msra.mxu0 %v622
    %644 = vmatprep.subr.bf16.mxu0 0
    %645 = vmatpush1.bf16.msra.mxu0 %v623
    %646 = vmatprep.subr.bf16.mxu0 0
    %647 = vmatpush1.bf16.msra.mxu0 %v624
    %648 = vmatprep.subr.bf16.mxu0 0
    %649 = vmatpush1.bf16.msra.mxu0 %v625
    %650 = vmatprep.subr.bf16.mxu0 0
    %651 = vmatpush1.bf16.msra.mxu0 0
    %652 = vmatprep.subr.bf16.mxu0 0
    %653 = vmatpush1.bf16.msra.mxu0 0
    %654 = vmatprep.subr.bf16.mxu0 0
    %655 = vmatpush1.bf16.msra.mxu0 0
    %656 = vmatprep.subr.bf16.mxu0 0
    %657 = vmatpush1.bf16.msra.mxu0 0
    %658 = vmatprep.subr.bf16.mxu0 0
    %659 = vmatpush1.bf16.msra.mxu0 0
    %660 = vmatprep.subr.bf16.mxu0 0
    %661 = vmatpush1.bf16.msra.mxu0 0
    %662 = vmatprep.subr.bf16.mxu0 0
    %663 = vmatpush1.bf16.msra.mxu0 0
    %664 = vmatprep.subr.bf16.mxu0 0
    %665 = vmatpush1.bf16.msra.mxu0 0
    %666 = vmatprep.mubr.bf16.mxu0 0
    %667 = vmatmul.mubr.bf16.gmra.mrb[0].mxu0 %v569
    %v668 = vpop.f32.mrb[0].mxu0
    %v669 = vadd.f32 0.0, %v668
    %v670 = vpop.f32.mrb[0].mxu0
    %v671 = vpop.f32.mrb[0].mxu0
    %v672 = vadd.f32 0.0, %v671
    %v673 = vpop.f32.mrb[0].mxu0
    %674 = vdwg.mxu0
    %v675 = vld [vmem:[%s4 + $0x10] ss:$0 sm:$0xff]
    %v676 = vld [vmem:[%s4 + $0x11] ss:$0 sm:$0xff]
    %v677 = vadd.f32 %v669, %v672
    %v678 = vrot.slane %v677, 4
    %v679 = vadd.f32 %v677, %v678
    %v680 = vrot.slane %v679, 2
    %v681 = vadd.f32 %v679, %v680
    %v682 = vrot.slane %v681, 1
    %v683 = vadd.f32 %v681, %v682
    %v684 = vmul.f32 %v683, %v257
    %v685 = vmul.f32 %v669, %v669
    %v686 = vmul.f32 %v672, %v672
    %v687 = vadd.f32 %v685, %v686
    %v688 = vrot.slane %v687, 4
    %v689 = vadd.f32 %v687, %v688
    %v690 = vrot.slane %v689, 2
    %v691 = vadd.f32 %v689, %v690
    %v692 = vrot.slane %v691, 1
    %v693 = vadd.f32 %v691, %v692
    %v694 = vmul.f32 %v693, %v257
    %v695 = vmul.f32 %v684, %v684
    %v696 = vsub.f32 %v694, %v695
    %v697 = vmax.f32 %v696, 0.0
    %v698 = vadd.f32 %v697, 1e-05
    %v699 = vrsqrt.pop %v698
    %v700 = vmul.f32 %v675, %v699
    %v701 = vmul.f32 %v684, %v700
    %v702 = vsub.f32 %v676, %v701
    %v703 = vmul.f32 %v669, %v700
    %v704 = vmul.f32 %v672, %v700
    %v705 = vadd.f32 %v703, %v702
    %v706 = vadd.f32 %v704, %v702
    %v707 = vmax.f32 %v705, 0.0
    %v708 = vmax.f32 %v706, 0.0
    %v709 = vld [vmem:[%s4 + $0x12] ss:$0 sm:$0xff]
    %v710 = vmul.f32 %v707, %v709
    %v711 = vmul.f32 %v708, %v709
    %712 = vadd.xlane.f32.xlu0 %v710
    %v713 = vpop.xlane.xlu0 %712
    %714 = vadd.xlane.f32.xlu0 %v711
    %v715 = vpop.xlane.xlu0 %714
    %v716 = vld [vmem:[%s4 + $0x13] ss:$0 sm:$0xff]
    %v717 = vadd.f32 %v713, %v716
    %v718 = vadd.f32 %v715, %v716
    %vm719 = vcmask 7168
    %720 = vst.msk [vmem:[%s5] sm:$0xff] %vm719, %v717
    %721 = vst.msk [vmem:[%s5 + $0x8] sm:$0xff] %vm719, %v718
    // Predicated region
    $region34: #{tpu_custom_call.1} parent=1 // pred_check
      _
    $region35: #{tpu_custom_call.1} parent=1 // pred_check_branch
      %723 = sbr.rel (0) target = $region37
    $region36: #{tpu_custom_call.1} parent=1 // pred_region
      _
    $region37: #{tpu_custom_call.1} parent=1 // pred_fallthru
      _
    // Predicated region
    $region38: #{tpu_custom_call.1} parent=1 // pred_check
      _
    $region39: #{tpu_custom_call.1} parent=1 // pred_check_branch
      %725 = sbr.rel (0) target = $region41
    $region40: #{tpu_custom_call.1} parent=1 // pred_region
      _
    $region41: #{tpu_custom_call.1} parent=1 // pred_fallthru
      _
    %726 = vsyncpa [#allocation3], 1
    %727 = vsyncpa [#allocation5], 1

</llo_original>
